<compile_context>
chip_gen: v7x
topology: tpu7x:2x2x1
jax: 0.10.0
libtpu: 0.0.40
codegen_flags: <defaults>
</compile_context>

<pallas_src>
import jax
import jax.numpy as jnp
from jax import lax
from jax.experimental import pallas as pl
from jax.experimental.pallas import tpu as pltpu


def _td_linear_kernel(x_ref, w_ref, b_ref, o_ref):
    # x_ref: (TM, F), w_ref: (H, F) torch layout, b_ref: (1, H), o_ref: (TM, H)
    # Contract last dim of x with last dim of w -> x @ w.T on the MXU, no
    # materialized transpose anywhere.
    acc = lax.dot_general(
        x_ref[...], w_ref[...],
        dimension_numbers=(((1,), (1,)), ((), ())),
        preferred_element_type=jnp.float32,
    )
    o_ref[...] = (acc + b_ref[...].astype(jnp.float32)).astype(o_ref.dtype)


def _pick_tm(M, F, H, itemsize, vmem_budget=24 * 1024 * 1024):
    """Largest 128-aligned (fallback 8-aligned) row tile such that the
    double-buffered x/y tiles plus the VMEM-resident weight stay inside a
    conservative budget (fits v7x's 32 MiB scoped / 64 MiB physical VMEM)."""
    resident = (F * H + H) * itemsize           # weight + bias held resident
    per_row = 2 * (F + H) * itemsize            # 2x (double-buffer) in + out
    avail = max(vmem_budget - resident, per_row * 8)
    tm = min(512, max(8, avail // per_row))
    if tm >= 128:
        tm = (tm // 128) * 128
    else:
        tm = (tm // 8) * 8
    return int(tm)


def _linear_pallas(x2d, weight, bias):
    """y = x2d @ weight.T + bias, row-tiled Pallas TPU kernel.

    weight: (H, F) torch Linear layout (transpose folded into the kernel dot).
    bias:   (H,)
    """
    M, F = x2d.shape
    H = weight.shape[0]
    out_dtype = x2d.dtype
    b_row = bias.reshape(1, H)
    itemsize = jnp.dtype(x2d.dtype).itemsize

    # TODO(synk): if F*H itself exceeds the VMEM budget, add a trailing
    # "arbitrary" K grid axis with an f32 scratch accumulator (P3 pattern).

    if M <= 512:
        # Single full block: full-extent dims are exempt from (8,128) tiling.
        tm = M
        m_pad = M
    else:
        tm = _pick_tm(M, F, H, itemsize)
        m_pad = pl.cdiv(M, tm) * tm
        if m_pad != M:
            x2d = jnp.pad(x2d, ((0, m_pad - M), (0, 0)))

    grid = (m_pad // tm,)

    cost = pl.CostEstimate(
        flops=2 * M * F * H,
        bytes_accessed=(M * F + F * H + H + M * H) * itemsize,
        transcendentals=0,
    )

    y = pl.pallas_call(
        _td_linear_kernel,
        out_shape=jax.ShapeDtypeStruct((m_pad, H), out_dtype),
        grid_spec=pltpu.PrefetchScalarGridSpec(
            num_scalar_prefetch=0,
            grid=grid,
            in_specs=[
                pl.BlockSpec((tm, F), lambda i: (i, 0)),   # x: streamed row tiles
                pl.BlockSpec((H, F), lambda i: (0, 0)),    # weight: VMEM-resident
                pl.BlockSpec((1, H), lambda i: (0, 0)),    # bias:   VMEM-resident
            ],
            out_specs=pl.BlockSpec((tm, H), lambda i: (i, 0)),
        ),
        compiler_params=pltpu.CompilerParams(
            # Independent row tiles -> megacore sharding on v7x; no-op on
            # single-TC v5e/v6e.
            dimension_semantics=("parallel",),
        ),
        cost_estimate=cost,
    )(x2d, weight, b_row)

    if m_pad != M:
        y = y[:M]
    return y


def time_distributed_linear(x, weight, bias, batch_first=False):
    """Mirrors TimeDistributed(nn.Linear(F, H), batch_first).forward(x).

    weight: (H, F)  (torch Linear convention, no wrapper-side transpose)
    bias:   (H,)
    """
    H = weight.shape[0]

    if x.ndim <= 2:
        # Degenerate case of the reference: module applied directly.
        y = _linear_pallas(x.reshape(-1, x.shape[-1]), weight, bias)
        return y.reshape(x.shape[:-1] + (H,))

    F_in = x.shape[-1]
    x_reshape = x.reshape(-1, F_in)                     # (-1, F)
    y = _linear_pallas(x_reshape, weight, bias)         # (-1, H)
    if batch_first:
        return y.reshape(x.shape[0], -1, H)             # (B, T, H)
    return y.reshape(-1, x.shape[1], H)                 # (T, B, H)


if __name__ == "__main__":
    key = jax.random.PRNGKey(0)
    kx, kw, kb, kx2, kw2, kb2 = jax.random.split(key, 6)

    # --- small canonical TimeDistributed(Linear) shapes: seq=8, batch=2 ---
    T, B, F, H = 8, 2, 32, 32
    x = jax.random.normal(kx, (T, B, F), dtype=jnp.float32)          # (T, B, F)
    weight = jax.random.normal(kw, (H, F), dtype=jnp.float32) * 0.1  # torch (H, F)
    bias = jax.random.normal(kb, (H,), dtype=jnp.float32) * 0.1

    y = jax.block_until_ready(
        time_distributed_linear(x, weight, bias, batch_first=False))
    y_ref = (x.reshape(-1, F) @ weight.T + bias).reshape(-1, B, H)
    assert y.shape == (T, B, H), y.shape
    assert jnp.allclose(y, y_ref, atol=1e-5, rtol=1e-5)

    # --- exercise the tiled (grid > 1) + ragged-M padding path ---
    T2, B2, F2, H2 = 96, 7, 128, 256     # M = 672 -> TM = 512, padded to 1024
    x2 = jax.random.normal(kx2, (T2, B2, F2), dtype=jnp.float32)
    w2 = jax.random.normal(kw2, (H2, F2), dtype=jnp.float32) * 0.05
    b2 = jax.random.normal(kb2, (H2,), dtype=jnp.float32) * 0.05

    y2 = jax.block_until_ready(
        time_distributed_linear(x2, w2, b2, batch_first=True))
    y2_ref = (x2.reshape(-1, F2) @ w2.T + b2).reshape(T2, -1, H2)
    assert y2.shape == (T2, B2, H2), y2.shape
    assert jnp.allclose(y2, y2_ref, atol=1e-4, rtol=1e-4)

    print("KERNEL_OK")
</pallas_src>

<mosaic_0001>
module attributes {stable_mosaic.version = 11 : i64} {
  func.func @_td_linear_kernel(%arg0: i32, %arg1: memref<16x32xf32, #tpu.memory_space<vmem>>, %arg2: memref<32x32xf32, #tpu.memory_space<vmem>>, %arg3: memref<1x32xf32, #tpu.memory_space<vmem>>, %arg4: memref<16x32xf32, #tpu.memory_space<vmem>>) attributes {dimension_semantics = [#tpu.dimension_semantics<parallel>], iteration_bounds = array<i64: 1>, scalar_prefetch = 0 : i64, scratch_operands = 0 : i64, tpu.core_type = #tpu.core_type<tc>, window_params = [{transform_indices = @transform_0, window_bounds = array<i64: 16, 32>}, {pipeline_mode = #tpu.pipeline_mode<synchronous>, transform_indices = @transform_1, window_bounds = array<i64: 32, 32>}, {pipeline_mode = #tpu.pipeline_mode<synchronous>, transform_indices = @transform_2, window_bounds = array<i64: 1, 32>}, {transform_indices = @transform_3, window_bounds = array<i64: 16, 32>}]} {
    %c0 = arith.constant 0 : index
    %c0_0 = arith.constant 0 : index
    %0 = vector.load %arg1[%c0, %c0_0] : memref<16x32xf32, #tpu.memory_space<vmem>>, vector<16x32xf32>
    %c0_1 = arith.constant 0 : index
    %c0_2 = arith.constant 0 : index
    %1 = vector.load %arg2[%c0_1, %c0_2] : memref<32x32xf32, #tpu.memory_space<vmem>>, vector<32x32xf32>
    %cst = arith.constant dense<0.000000e+00> : vector<16x32xf32>
    %2 = tpu.matmul %0, %1, %cst {dimension_numbers = #tpu.dot_dimension_numbers<[1], [1], [0], [0], [0, 0, 1, 0], [], []>} : vector<16x32xf32>, vector<32x32xf32>, vector<16x32xf32> -> vector<16x32xf32>
    %c0_3 = arith.constant 0 : index
    %c0_4 = arith.constant 0 : index
    %3 = vector.load %arg3[%c0_3, %c0_4] : memref<1x32xf32, #tpu.memory_space<vmem>>, vector<1x32xf32>
    %4 = vector.broadcast %3 : vector<1x32xf32> to vector<16x32xf32>
    %5 = arith.addf %2, %4 : vector<16x32xf32>
    %c0_5 = arith.constant 0 : index
    %c0_6 = arith.constant 0 : index
    %6 = vector.load %arg4[%c0_5, %c0_6] : memref<16x32xf32, #tpu.memory_space<vmem>>, vector<16x32xf32>
    tpu.vector_store %arg4[%c0_5, %c0_6], %5 {strides = array<i32>} : memref<16x32xf32, #tpu.memory_space<vmem>>, vector<16x32xf32>,
    return
  }
  func.func @transform_0(%arg0: i32) -> (i32, i32) {
    %c0_i32 = arith.constant 0 : i32
    %c0_i32_0 = arith.constant 0 : i32
    return %arg0, %c0_i32 : i32, i32
  }
  func.func @transform_1(%arg0: i32) -> (i32, i32) {
    %c0_i32 = arith.constant 0 : i32
    %c0_i32_0 = arith.constant 0 : i32
    %c0_i32_1 = arith.constant 0 : i32
    return %c0_i32, %c0_i32_0 : i32, i32
  }
  func.func @transform_2(%arg0: i32) -> (i32, i32) {
    %c0_i32 = arith.constant 0 : i32
    %c0_i32_0 = arith.constant 0 : i32
    %c0_i32_1 = arith.constant 0 : i32
    return %c0_i32, %c0_i32_0 : i32, i32
  }
  func.func @transform_3(%arg0: i32) -> (i32, i32) {
    %c0_i32 = arith.constant 0 : i32
    %c0_i32_0 = arith.constant 0 : i32
    return %arg0, %c0_i32 : i32, i32
  }
}

</mosaic_0001>

<llo_original>
// kernel: tpu_custom_call.1
$region0: #{tpu_custom_call.1}
  #allocation0 [shape = 'u32[]', space=smem, size = 0x4, offset = 0x4, fixed_abs, tag = 'smem constant byte address 0x4 - core index']
  #allocation1 [shape = 'u32[144,128]{1,0:T(1,128)}', space=vmem, size = 0x12000, scoped, tag = 'internal scratch']
  %s0 = inlined_call_operand.hbm [shape: f32[16,32], index: 0, kind: input, shape index: {}]
  %s1 = inlined_call_operand.hbm [shape: f32[32,32], index: 1, kind: input, shape index: {}]
  %s2 = inlined_call_operand.vmem [shape: f32[1,32], index: 2, kind: input, shape index: {}]
  %s3 = inlined_call_operand.hbm [shape: f32[16,32], index: 3, kind: output, shape index: {}]
  %s4 = sld [smem:[#allocation0]]
  $region30: #{tpu_custom_call.1} parent=0
    _
  %s6 = ssub.s32 1, %s4
  %s7 = scalar_select 0, %s6, %s4
  $region1: #{tpu_custom_call.1} parent=0
    #allocation2 [shape = 'u8[8192]{0}', space=vmem, size = 0x2000, scoped, tag = 'input window, operand 0, single buffered']
    #allocation3 [shape = 's32[1]{0}', space=sflag, size = 0x4, scoped, tag = 'scoped memory for tpu_custom_call.1']
    #allocation4 [shape = 's32[1]{0}', space=sflag, size = 0x4, scoped, tag = 'scoped memory for tpu_custom_call.1']
    #allocation5 [shape = 'u8[16384]{0}', space=vmem, size = 0x4000, scoped, tag = 'input window, operand 1, single buffered']
    #allocation6 [shape = 's32[1]{0}', space=sflag, size = 0x4, scoped, tag = 'scoped memory for tpu_custom_call.1']
    #allocation7 [shape = 'u8[8192]{0}', space=vmem, size = 0x2000, scoped, tag = 'output window, operand 0, single buffered']
    %8 = vsyncpa [#allocation3], 0
    %9 = vsyncpa [#allocation6], 0
    %10 = vsyncpa [#allocation4], 0
    // Predicated region
    $region2: #{tpu_custom_call.1} parent=1 // pred_check
      _
    $region3: #{tpu_custom_call.1} parent=1 // pred_check_branch
      %12 = sbr.rel (0) target = $region5
    $region4: #{tpu_custom_call.1} parent=1 // pred_region
      %s14 = ssub.s32 256, 256
      %15 = vsyncadd [#allocation3], %s14
      %s16 = sshll.u32 [#allocation2], 4
      %s17 = int_to_ptr.vmem [resolvable:$true] %s16
      %22 = dma.hbm_to_vmem [thread:$0]  %s0, 256, %s17, [#allocation3], 128, 128, 8
    $region5: #{tpu_custom_call.1} parent=1 // pred_fallthru
      _
    // Predicated region
    $region6: #{tpu_custom_call.1} parent=1 // pred_check
      _
    $region7: #{tpu_custom_call.1} parent=1 // pred_check_branch
      %24 = sbr.rel (0) target = $region9
    $region8: #{tpu_custom_call.1} parent=1 // pred_region
      %s26 = ssub.s32 512, 512
      %27 = vsyncadd [#allocation6], %s26
      %s28 = sshll.u32 [#allocation5], 4
      %s29 = int_to_ptr.vmem [resolvable:$true] %s28
      %34 = dma.hbm_to_vmem [thread:$0]  %s1, 512, %s29, [#allocation6], 128, 128, 8
    $region9: #{tpu_custom_call.1} parent=1 // pred_fallthru
      _
    // Predicated region
    $region10: #{tpu_custom_call.1} parent=1 // pred_check
      _
    $region11: #{tpu_custom_call.1} parent=1 // pred_check_branch
      %36 = sbr.rel (0) target = $region13
    $region12: #{tpu_custom_call.1} parent=1 // pred_region
      _
    $region13: #{tpu_custom_call.1} parent=1 // pred_fallthru
      _
    // Predicated region
    $region14: #{tpu_custom_call.1} parent=1 // pred_check
      _
    $region15: #{tpu_custom_call.1} parent=1 // pred_check_branch
      %38 = sbr.rel (0) target = $region17
    $region16: #{tpu_custom_call.1} parent=1 // pred_region
      %39 = dma.done [#allocation3], 256
    $region17: #{tpu_custom_call.1} parent=1 // pred_fallthru
      _
    // Predicated region
    $region18: #{tpu_custom_call.1} parent=1 // pred_check
      _
    $region19: #{tpu_custom_call.1} parent=1 // pred_check_branch
      %41 = sbr.rel (0) target = $region21
    $region20: #{tpu_custom_call.1} parent=1 // pred_region
      %42 = dma.done [#allocation6], 512
    $region21: #{tpu_custom_call.1} parent=1 // pred_fallthru
      _
    %v43 = vld [vmem:[#allocation2] sm:$0xff]
    %v44 = vld [vmem:[#allocation2 + $0x8] sm:$0xff]
    %v45 = vld [vmem:[#allocation5] sm:$0xff]
    %v46 = vld [vmem:[#allocation5 + $0x8] sm:$0xff]
    %v47 = vld [vmem:[#allocation5 + $0x10] sm:$0xff]
    %v48 = vld [vmem:[#allocation5 + $0x18] sm:$0xff]
    %v49 = vld [vmem:[%s2] sm:$0x1]
    %v51 = vlaneseq
    %v52 = vshrl.u32 %v51, 7
    %v53 = vsub.s32 0, %v52
    %v54 = vrot.slane %v49, %v53
    %vm56 = vcmask 261120
    %v58 = vsel %vm56, %v43, 0
    %v61 = vsel %vm56, %v44, 0
    %v64 = vsel %vm56, %v45, 0
    %v67 = vsel %vm56, %v46, 0
    %v70 = vsel %vm56, %v47, 0
    %v73 = vsel %vm56, %v48, 0
    %75 = vmatprep.subr.mxu0 0.0
    %76 = vmatpush1.xpose.msra.mxu0 %v64
    %77 = vmatprep.subr.mxu0 0.0
    %78 = vmatpush1.xpose.msra.mxu0 %v67
    %79 = vmatprep.subr.mxu0 0.0
    %80 = vmatpush1.xpose.msra.mxu0 %v70
    %81 = vmatprep.subr.mxu0 0.0
    %82 = vmatpush1.xpose.msra.mxu0 %v73
    %83 = vmatprep.subr.mxu0 0.0
    %84 = vmatpush1.xpose.msra.mxu0 0.0
    %85 = vmatprep.subr.mxu0 0.0
    %86 = vmatpush1.xpose.msra.mxu0 0.0
    %87 = vmatprep.subr.mxu0 0.0
    %88 = vmatpush1.xpose.msra.mxu0 0.0
    %89 = vmatprep.subr.mxu0 0.0
    %90 = vmatpush1.xpose.msra.mxu0 0.0
    %91 = vmatprep.subr.mxu0 0.0
    %92 = vmatpush1.xpose.msra.mxu0 0.0
    %93 = vmatprep.subr.mxu0 0.0
    %94 = vmatpush1.xpose.msra.mxu0 0.0
    %95 = vmatprep.subr.mxu0 0.0
    %96 = vmatpush1.xpose.msra.mxu0 0.0
    %97 = vmatprep.subr.mxu0 0.0
    %98 = vmatpush1.xpose.msra.mxu0 0.0
    %99 = vmatprep.subr.mxu0 0.0
    %100 = vmatpush1.xpose.msra.mxu0 0.0
    %101 = vmatprep.subr.mxu0 0.0
    %102 = vmatpush1.xpose.msra.mxu0 0.0
    %103 = vmatprep.subr.mxu0 0.0
    %104 = vmatpush1.xpose.msra.mxu0 0.0
    %105 = vmatprep.subr.mxu0 0.0
    %106 = vmatpush1.xpose.msra.mxu0 0.0
    %107 = vmatprep.subr.mxu0 0.0
    %108 = vmatpush1.xpose.msra.mxu0 0.0
    %109 = vmatprep.subr.mxu0 0.0
    %110 = vmatpush1.xpose.msra.mxu0 0.0
    %111 = vmatprep.subr.mxu0 0.0
    %112 = vmatpush1.xpose.msra.mxu0 0.0
    %113 = vmatprep.subr.mxu0 0.0
    %114 = vmatpush1.xpose.msra.mxu0 0.0
    %115 = vmatprep.subr.mxu0 0.0
    %116 = vmatpush1.xpose.msra.mxu0 0.0
    %117 = vmatprep.subr.mxu0 0.0
    %118 = vmatpush1.xpose.msra.mxu0 0.0
    %119 = vmatprep.subr.mxu0 0.0
    %120 = vmatpush1.xpose.msra.mxu0 0.0
    %121 = vmatprep.subr.mxu0 0.0
    %122 = vmatpush1.xpose.msra.mxu0 0.0
    %123 = vmatprep.subr.mxu0 0.0
    %124 = vmatpush1.xpose.msra.mxu0 0.0
    %125 = vmatprep.subr.mxu0 0.0
    %126 = vmatpush1.xpose.msra.mxu0 0.0
    %127 = vmatprep.subr.mxu0 0.0
    %128 = vmatpush1.xpose.msra.mxu0 0.0
    %129 = vmatprep.subr.mxu0 0.0
    %130 = vmatpush1.xpose.msra.mxu0 0.0
    %131 = vmatprep.subr.mxu0 0.0
    %132 = vmatpush1.xpose.msra.mxu0 0.0
    %133 = vmatprep.subr.mxu0 0.0
    %134 = vmatpush1.xpose.msra.mxu0 0.0
    %135 = vmatprep.subr.mxu0 0.0
    %136 = vmatpush1.xpose.msra.mxu0 0.0
    %137 = vmatprep.subr.mxu0 0.0
    %138 = vmatpush1.xpose.msra.mxu0 0.0
    %139 = vmatprep.mubr.f32.mxu0 0.0
    %140 = vmatmul.mubr.f32.gmra.mrb[0].mxu0 %v58
    %v141 = vpop.f32.mrb[0].mxu0
    %v142 = vadd.f32 %v54, %v141
    %v143 = vpop.f32.mrb[0].mxu0
    %144 = vmatprep.mubr.f32.mxu0 0.0
    %145 = vmatmul.mubr.f32.gmra.mrb[0].mxu0 %v61
    %v146 = vpop.f32.mrb[0].mxu0
    %v147 = vadd.f32 %v54, %v146
    %v148 = vpop.f32.mrb[0].mxu0
    %149 = vdwg.mxu0
    %150 = vst.msk [vmem:[#allocation7] sm:$0xff] %vm56, %v142
    %151 = vst.msk [vmem:[#allocation7 + $0x8] sm:$0xff] %vm56, %v147
    // Predicated region
    $region22: #{tpu_custom_call.1} parent=1 // pred_check
      _
    $region23: #{tpu_custom_call.1} parent=1 // pred_check_branch
      %153 = sbr.rel (0) target = $region25
    $region24: #{tpu_custom_call.1} parent=1 // pred_region
      %s155 = ssub.s32 256, 256
      %156 = vsyncadd [#allocation4], %s155
      %s157 = sshll.u32 [#allocation7], 4
      %s158 = int_to_ptr.vmem [resolvable:$true] %s157
      %163 = dma.vmem_to_hbm [thread:$0]  %s158, 256, %s3, [#allocation4], 128, 128, 8
    $region25: #{tpu_custom_call.1} parent=1 // pred_fallthru
      _
    // Predicated region
    $region26: #{tpu_custom_call.1} parent=1 // pred_check
      _
    $region27: #{tpu_custom_call.1} parent=1 // pred_check_branch
      %165 = sbr.rel (0) target = $region29
    $region28: #{tpu_custom_call.1} parent=1 // pred_region
      %166 = dma.done [#allocation4], 256
    $region29: #{tpu_custom_call.1} parent=1 // pred_fallthru
      _
    %167 = vsyncpa [#allocation3], 1
    %168 = vsyncpa [#allocation6], 1
    %169 = vsyncpa [#allocation4], 1

</llo_original>
